<compile_context>
chip_gen: v6e
topology: v6e:2x2x1
jax: 0.10.0
libtpu: 0.0.40
codegen_flags: <defaults>
</compile_context>

<pallas_src>
import functools

import jax
import jax.numpy as jnp
from jax.experimental import pallas as pl
from jax.experimental.pallas import tpu as pltpu


def _round_up(n, m):
    return ((n + m - 1) // m) * m


def critic_kernel(x_ref, w1_ref, b1_ref, w2_ref, b2_ref, w3_ref, b3_ref, o_ref):
    # Layer 1: (TB, D)bf16 @ (D, H1)bf16 -> f32 accumulate; tanh in f32.
    h1 = jnp.tanh(
        jnp.dot(x_ref[...].astype(jnp.bfloat16), w1_ref[...],
                preferred_element_type=jnp.float32)
        + b1_ref[...]
    )
    # Layer 2: (TB, H1)bf16 @ (H1, H2)bf16 -> f32 accumulate; tanh in f32.
    h2 = jnp.tanh(
        jnp.dot(h1.astype(jnp.bfloat16), w2_ref[...],
                preferred_element_type=jnp.float32)
        + b2_ref[...]
    )
    # Output layer (H2 -> 1): VPU multiply + XLU lane reduce (keeps the N=1
    # column off the MXU). b3 is a scalar read from SMEM.
    o_ref[...] = (
        jnp.sum(h2 * w3_ref[...], axis=-1, keepdims=True) + b3_ref[0, 0]
    )


def init_critic_params(key, in_features, hidden_sizes=(64, 64)):
    """torch.nn.Linear default weight init (U(+-1/sqrt(fan_in))), biases zeroed
    as in the module's __init__. Weights stored (in_dim, out_dim) so the kernel
    computes x @ W + b (== torch's x @ W.T + b with W=(out,in))."""
    dims = [in_features] + list(hidden_sizes) + [1]
    params = []
    for i in range(len(dims) - 1):
        key, sub = jax.random.split(key)
        fan_in, fan_out = dims[i], dims[i + 1]
        bound = 1.0 / jnp.sqrt(jnp.float32(fan_in))
        w = jax.random.uniform(
            sub, (fan_in, fan_out), dtype=jnp.float32, minval=-bound, maxval=bound
        )
        b = jnp.zeros((1, fan_out), dtype=jnp.float32)
        params.append((w, b))
    return params


@functools.partial(jax.jit, static_argnames=("block_batch",))
def critic_forward(x, params, *, block_batch=1024):
    """x: (B, in_features) float32 -> v: (B,) float32 (torch .squeeze() semantics)."""
    (w1, b1), (w2, b2), (w3, b3) = params
    B, D = x.shape
    H1 = w1.shape[1]
    H2 = w2.shape[1]

    # Batch tile: multiple of 8 sublanes, capped at `block_batch` rows so the
    # per-step x tile stays small even under v7x's 64 MiB VMEM / 32 MiB scoped
    # default (at D=32, a 1024-row f32 tile is 128 KiB; double-buffered 256 KiB).
    TB = min(block_batch, _round_up(B, 8))
    B_pad = _round_up(B, TB)
    if B_pad != B:
        # Zero-pad the tail; padded rows are sliced off below.
        x = jnp.pad(x, ((0, B_pad - B), (0, 0)))

    # One-shot tiny casts / reshapes of the parameters (outside the kernel).
    w1_bf = w1.astype(jnp.bfloat16)
    w2_bf = w2.astype(jnp.bfloat16)
    w3_row = w3.reshape(1, H2)   # (H2, 1) -> (1, H2) for the lane reduce
    b3_s = b3.reshape(1, 1)      # scalar, routed through SMEM

    grid = (B_pad // TB,)

    cost = pl.CostEstimate(
        flops=2 * B_pad * (D * H1 + H1 * H2 + H2),
        transcendentals=B_pad * (H1 + H2),
        bytes_accessed=(
            B_pad * D * 4            # x in (f32)
            + B_pad * 4              # v out (f32)
            + (D * H1 + H1 * H2) * 2  # bf16 weights
            + (H1 + H2 + H2 + 1) * 4  # biases + w3 row (f32)
        ),
    )

    out = pl.pallas_call(
        critic_kernel,
        out_shape=jax.ShapeDtypeStruct((B_pad, 1), jnp.float32),
        grid=grid,
        in_specs=[
            pl.BlockSpec((TB, D), lambda i: (i, 0)),      # x: streamed per tile
            pl.BlockSpec((D, H1), lambda i: (0, 0)),      # weights: VMEM-resident
            pl.BlockSpec((1, H1), lambda i: (0, 0)),
            pl.BlockSpec((H1, H2), lambda i: (0, 0)),
            pl.BlockSpec((1, H2), lambda i: (0, 0)),
            pl.BlockSpec((1, H2), lambda i: (0, 0)),      # w3 as a lane row
            pl.BlockSpec((1, 1), lambda i: (0, 0),
                         memory_space=pltpu.MemorySpace.SMEM),  # b3 scalar
        ],
        out_specs=pl.BlockSpec((TB, 1), lambda i: (i, 0)),
        compiler_params=pltpu.CompilerParams(
            dimension_semantics=("parallel",)),
        cost_estimate=cost,
    )(x, w1_bf, b1, w2_bf, b2, w3_row, b3_s)

    # Drop padded tail rows, then torch-style .squeeze(): (B, 1) -> (B,)
    return jnp.squeeze(out[:B])


if __name__ == "__main__":
    key = jax.random.PRNGKey(0)
    batch = 8
    in_features = 32
    hidden_sizes = (64, 64)

    key, xk = jax.random.split(key)
    x = jax.random.normal(xk, (batch, in_features), dtype=jnp.float32)

    params = init_critic_params(key, in_features, hidden_sizes)

    v = critic_forward(x, params)
    jax.block_until_ready(v)

    # Reference 1: pure-JAX forward with the same bf16 matmul inputs / f32 accum.
    (w1, b1), (w2, b2), (w3, b3) = params
    h1 = jnp.tanh(
        jnp.dot(x.astype(jnp.bfloat16), w1.astype(jnp.bfloat16),
                preferred_element_type=jnp.float32) + b1)
    h2 = jnp.tanh(
        jnp.dot(h1.astype(jnp.bfloat16), w2.astype(jnp.bfloat16),
                preferred_element_type=jnp.float32) + b2)
    ref_bf16 = jnp.squeeze(
        jnp.sum(h2 * w3.reshape(1, -1), axis=-1, keepdims=True) + b3)

    # Reference 2: full-f32 forward (loose check — bounds the bf16 rounding).
    ref_f32 = jnp.squeeze(jnp.tanh(jnp.tanh(x @ w1 + b1) @ w2 + b2) @ w3 + b3)

    assert v.shape == (batch,), f"bad output shape {v.shape}"
    assert jnp.allclose(v, ref_bf16, atol=1e-3, rtol=1e-3), (v, ref_bf16)
    assert jnp.allclose(v, ref_f32, atol=5e-2, rtol=0.0), (v, ref_f32)

    print("KERNEL_OK")
</pallas_src>

<mosaic_0001>
module attributes {stable_mosaic.version = 11 : i64} {
  func.func @critic_kernel(%arg0: i32, %arg1: memref<8x32xf32, #tpu.memory_space<vmem>>, %arg2: memref<32x64xbf16, #tpu.memory_space<vmem>>, %arg3: memref<1x64xf32, #tpu.memory_space<vmem>>, %arg4: memref<64x64xbf16, #tpu.memory_space<vmem>>, %arg5: memref<1x64xf32, #tpu.memory_space<vmem>>, %arg6: memref<1x64xf32, #tpu.memory_space<vmem>>, %arg7: memref<1x1xf32, #tpu.memory_space<smem>>, %arg8: memref<8x1xf32, #tpu.memory_space<vmem>>) attributes {dimension_semantics = [#tpu.dimension_semantics<parallel>], iteration_bounds = array<i64: 1>, scalar_prefetch = 0 : i64, scratch_operands = 0 : i64, tpu.core_type = #tpu.core_type<tc>, window_params = [{transform_indices = @transform_0, window_bounds = array<i64: 8, 32>}, {pipeline_mode = #tpu.pipeline_mode<synchronous>, transform_indices = @transform_1, window_bounds = array<i64: 32, 64>}, {pipeline_mode = #tpu.pipeline_mode<synchronous>, transform_indices = @transform_2, window_bounds = array<i64: 1, 64>}, {pipeline_mode = #tpu.pipeline_mode<synchronous>, transform_indices = @transform_3, window_bounds = array<i64: 64, 64>}, {pipeline_mode = #tpu.pipeline_mode<synchronous>, transform_indices = @transform_4, window_bounds = array<i64: 1, 64>}, {pipeline_mode = #tpu.pipeline_mode<synchronous>, transform_indices = @transform_5, window_bounds = array<i64: 1, 64>}, {transform_indices = @transform_6, window_bounds = array<i64: 1, 1>}, {transform_indices = @transform_7, window_bounds = array<i64: 8, 1>}]} {
    %c0 = arith.constant 0 : index
    %c0_0 = arith.constant 0 : index
    %0 = vector.load %arg1[%c0, %c0_0] : memref<8x32xf32, #tpu.memory_space<vmem>>, vector<8x32xf32>
    %1 = arith.truncf %0 : vector<8x32xf32> to vector<8x32xbf16>
    %c0_1 = arith.constant 0 : index
    %c0_2 = arith.constant 0 : index
    %2 = vector.load %arg2[%c0_1, %c0_2] : memref<32x64xbf16, #tpu.memory_space<vmem>>, vector<32x64xbf16>
    %cst = arith.constant dense<0.000000e+00> : vector<8x64xf32>
    %3 = tpu.matmul %1, %2, %cst {dimension_numbers = #tpu.dot_dimension_numbers<[1], [0], [0], [1], [0, 0, 1, 1], [], []>} : vector<8x32xbf16>, vector<32x64xbf16>, vector<8x64xf32> -> vector<8x64xf32>
    %c0_3 = arith.constant 0 : index
    %c0_4 = arith.constant 0 : index
    %4 = vector.load %arg3[%c0_3, %c0_4] : memref<1x64xf32, #tpu.memory_space<vmem>>, vector<1x64xf32>
    %5 = vector.broadcast %4 : vector<1x64xf32> to vector<8x64xf32>
    %6 = arith.addf %3, %5 : vector<8x64xf32>
    %7 = math.tanh %6 : vector<8x64xf32>
    %8 = arith.truncf %7 : vector<8x64xf32> to vector<8x64xbf16>
    %c0_5 = arith.constant 0 : index
    %c0_6 = arith.constant 0 : index
    %9 = vector.load %arg4[%c0_5, %c0_6] : memref<64x64xbf16, #tpu.memory_space<vmem>>, vector<64x64xbf16>
    %cst_7 = arith.constant dense<0.000000e+00> : vector<8x64xf32>
    %10 = tpu.matmul %8, %9, %cst_7 {dimension_numbers = #tpu.dot_dimension_numbers<[1], [0], [0], [1], [0, 0, 1, 1], [], []>} : vector<8x64xbf16>, vector<64x64xbf16>, vector<8x64xf32> -> vector<8x64xf32>
    %c0_8 = arith.constant 0 : index
    %c0_9 = arith.constant 0 : index
    %11 = vector.load %arg5[%c0_8, %c0_9] : memref<1x64xf32, #tpu.memory_space<vmem>>, vector<1x64xf32>
    %12 = vector.broadcast %11 : vector<1x64xf32> to vector<8x64xf32>
    %13 = arith.addf %10, %12 : vector<8x64xf32>
    %14 = math.tanh %13 : vector<8x64xf32>
    %c0_10 = arith.constant 0 : index
    %c0_11 = arith.constant 0 : index
    %15 = vector.load %arg6[%c0_10, %c0_11] : memref<1x64xf32, #tpu.memory_space<vmem>>, vector<1x64xf32>
    %16 = vector.broadcast %15 : vector<1x64xf32> to vector<8x64xf32>
    %17 = arith.mulf %14, %16 : vector<8x64xf32>
    %cst_12 = arith.constant dense<0.000000e+00> : vector<8xf32>
    %18 = vector.multi_reduction <add>, %17, %cst_12 [1] : vector<8x64xf32> to vector<8xf32>
    %19 = vector.shape_cast %18 : vector<8xf32> to vector<8x1xf32>
    %c0_13 = arith.constant 0 : index
    %c0_14 = arith.constant 0 : index
    %20 = memref.load %arg7[%c0_13, %c0_14] : memref<1x1xf32, #tpu.memory_space<smem>>
    %21 = vector.broadcast %20 : f32 to vector<8x1xf32>
    %22 = arith.addf %19, %21 : vector<8x1xf32>
    %c0_15 = arith.constant 0 : index
    %c0_16 = arith.constant 0 : index
    %23 = vector.load %arg8[%c0_15, %c0_16] : memref<8x1xf32, #tpu.memory_space<vmem>>, vector<8x1xf32>
    tpu.vector_store %arg8[%c0_15, %c0_16], %22 {strides = array<i32>} : memref<8x1xf32, #tpu.memory_space<vmem>>, vector<8x1xf32>,
    return
  }
  func.func @transform_0(%arg0: i32) -> (i32, i32) {
    %c0_i32 = arith.constant 0 : i32
    %c0_i32_0 = arith.constant 0 : i32
    return %arg0, %c0_i32 : i32, i32
  }
  func.func @transform_1(%arg0: i32) -> (i32, i32) {
    %c0_i32 = arith.constant 0 : i32
    %c0_i32_0 = arith.constant 0 : i32
    %c0_i32_1 = arith.constant 0 : i32
    return %c0_i32, %c0_i32_0 : i32, i32
  }
  func.func @transform_2(%arg0: i32) -> (i32, i32) {
    %c0_i32 = arith.constant 0 : i32
    %c0_i32_0 = arith.constant 0 : i32
    %c0_i32_1 = arith.constant 0 : i32
    return %c0_i32, %c0_i32_0 : i32, i32
  }
  func.func @transform_3(%arg0: i32) -> (i32, i32) {
    %c0_i32 = arith.constant 0 : i32
    %c0_i32_0 = arith.constant 0 : i32
    %c0_i32_1 = arith.constant 0 : i32
    return %c0_i32, %c0_i32_0 : i32, i32
  }
  func.func @transform_4(%arg0: i32) -> (i32, i32) {
    %c0_i32 = arith.constant 0 : i32
    %c0_i32_0 = arith.constant 0 : i32
    %c0_i32_1 = arith.constant 0 : i32
    return %c0_i32, %c0_i32_0 : i32, i32
  }
  func.func @transform_5(%arg0: i32) -> (i32, i32) {
    %c0_i32 = arith.constant 0 : i32
    %c0_i32_0 = arith.constant 0 : i32
    %c0_i32_1 = arith.constant 0 : i32
    return %c0_i32, %c0_i32_0 : i32, i32
  }
  func.func @transform_6(%arg0: i32) -> (i32, i32) {
    %c0_i32 = arith.constant 0 : i32
    %c0_i32_0 = arith.constant 0 : i32
    %c0_i32_1 = arith.constant 0 : i32
    return %c0_i32, %c0_i32_0 : i32, i32
  }
  func.func @transform_7(%arg0: i32) -> (i32, i32) {
    %c0_i32 = arith.constant 0 : i32
    %c0_i32_0 = arith.constant 0 : i32
    return %arg0, %c0_i32 : i32, i32
  }
}

</mosaic_0001>

<llo_original>
// kernel: critic_forward.1
$region0: #{critic_forward.1}
  #allocation0 [shape = 'u32[]', space=smem, size = 0x4, offset = 0x4, fixed_abs, tag = 'smem constant byte address 0x4 - core index']
  #allocation1 [shape = 'u32[144,128]{1,0:T(1,128)}', space=vmem, size = 0x12000, scoped, tag = 'internal scratch']
  #allocation2 [shape = 'f32[1,1]{1,0:T(1,128)S(6)}', space=smem, size = 0x200, scoped, tag = 'scoped memory for critic_forward.1']
  %s0 = inlined_call_operand.vmem [shape: f32[8,32], index: 0, kind: input, shape index: {}]
  %s1 = inlined_call_operand.vmem [shape: bf16[32,64], index: 1, kind: input, shape index: {}]
  %s2 = inlined_call_operand.vmem [shape: f32[1,64], index: 2, kind: input, shape index: {}]
  %s3 = inlined_call_operand.vmem [shape: bf16[64,64], index: 3, kind: input, shape index: {}]
  %s4 = inlined_call_operand.vmem [shape: f32[1,64], index: 4, kind: input, shape index: {}]
  %s5 = inlined_call_operand.vmem [shape: f32[1,64], index: 5, kind: input, shape index: {}]
  %s6 = inlined_call_operand.<no memory space> [shape: f32[1,1], index: 6, kind: input, shape index: {}]
  %s7 = inlined_call_operand.vmem [shape: f32[8,1], index: 7, kind: output, shape index: {}]
  %s8 = sld [smem:[#allocation0]]
  $region38: #{critic_forward.1} parent=0
    _
  %s10 = ssub.s32 1, %s8
  %s11 = scalar_select 0, %s10, %s8
  %12 = sst [smem:[#allocation2]] %s6
  // Predicated region
  $region2: #{critic_forward.1} parent=0 // pred_check
    _
  $region3: #{critic_forward.1} parent=0 // pred_check_branch
    %14 = sbr.rel (0) target = $region5
  $region4: #{critic_forward.1} parent=0 // pred_region
    _
  $region5: #{critic_forward.1} parent=0 // pred_fallthru
    _
  // Predicated region
  $region6: #{critic_forward.1} parent=0 // pred_check
    _
  $region7: #{critic_forward.1} parent=0 // pred_check_branch
    %16 = sbr.rel (0) target = $region9
  $region8: #{critic_forward.1} parent=0 // pred_region
    _
  $region9: #{critic_forward.1} parent=0 // pred_fallthru
    _
  // Predicated region
  $region10: #{critic_forward.1} parent=0 // pred_check
    _
  $region11: #{critic_forward.1} parent=0 // pred_check_branch
    %18 = sbr.rel (0) target = $region13
  $region12: #{critic_forward.1} parent=0 // pred_region
    _
  $region13: #{critic_forward.1} parent=0 // pred_fallthru
    _
  // Predicated region
  $region14: #{critic_forward.1} parent=0 // pred_check
    _
  $region15: #{critic_forward.1} parent=0 // pred_check_branch
    %20 = sbr.rel (0) target = $region17
  $region16: #{critic_forward.1} parent=0 // pred_region
    _
  $region17: #{critic_forward.1} parent=0 // pred_fallthru
    _
  // Predicated region
  $region18: #{critic_forward.1} parent=0 // pred_check
    _
  $region19: #{critic_forward.1} parent=0 // pred_check_branch
    %22 = sbr.rel (0) target = $region21
  $region20: #{critic_forward.1} parent=0 // pred_region
    _
  $region21: #{critic_forward.1} parent=0 // pred_fallthru
    _
  // Predicated region
  $region22: #{critic_forward.1} parent=0 // pred_check
    _
  $region23: #{critic_forward.1} parent=0 // pred_check_branch
    %24 = sbr.rel (0) target = $region25
  $region24: #{critic_forward.1} parent=0 // pred_region
    _
  $region25: #{critic_forward.1} parent=0 // pred_fallthru
    _
  // Predicated region
  $region26: #{critic_forward.1} parent=0 // pred_check
    _
  $region27: #{critic_forward.1} parent=0 // pred_check_branch
    %26 = sbr.rel (0) target = $region29
  $region28: #{critic_forward.1} parent=0 // pred_region
    _
  $region29: #{critic_forward.1} parent=0 // pred_fallthru
    _
  %v28 = vld [vmem:[%s0] sm:$0xff]
  %v29 = vpack.c.bf16 %v28, %v28
  %v30 = vld [vmem:[%s1] sm:$0xf]
  %v31 = vld [vmem:[%s1 + $0x4] sm:$0xf]
  %v32 = vld [vmem:[%s1 + $0x8] sm:$0xf]
  %v33 = vld [vmem:[%s1 + $0xc] sm:$0xf]
  %v34 = vld [vmem:[%s2] sm:$0x1]
  %v36 = vlaneseq
  %v37 = vshrl.u32 %v36, 7
  %v38 = vsub.s32 0, %v37
  %v39 = vrot.slane %v34, %v38
  %v45 = vunpack.c.l.b16 %v30
  %v46 = vunpack.c.l.b16 %v31
  %v47 = vunpack.c.l.b16 %v32
  %v48 = vunpack.c.l.b16 %v33
  %v49 = vpack.c.b16 %v46, %v45
  %v50 = vpack.c.b16 %v48, %v47
  %vm53 = vcmask 261120
  %v55 = vsel %vm53, %v29, 0
  %57 = vmatprep.subr.bf16.mxu0 0
  %58 = vmatpush1.bf16.msra.mxu0 0
  %59 = vmatprep.subr.bf16.mxu0 0
  %60 = vmatpush1.bf16.msra.mxu0 0
  %61 = vmatprep.subr.bf16.mxu0 0
  %62 = vmatpush1.bf16.msra.mxu0 0
  %63 = vmatprep.subr.bf16.mxu0 0
  %64 = vmatpush1.bf16.msra.mxu0 0
  %65 = vmatprep.subr.bf16.mxu0 0
  %66 = vmatpush1.bf16.msra.mxu0 0
  %67 = vmatprep.subr.bf16.mxu0 0
  %68 = vmatpush1.bf16.msra.mxu0 0
  %69 = vmatprep.subr.bf16.mxu0 0
  %70 = vmatpush1.bf16.msra.mxu0 %v50
  %71 = vmatprep.subr.bf16.mxu0 0
  %72 = vmatpush1.bf16.msra.mxu0 %v49
  %73 = vmatprep.subr.bf16.mxu0 0
  %74 = vmatpush2.bf16.msra.mxu0 0
  %75 = vmatprep.subr.bf16.mxu0 0
  %76 = vmatpush2.bf16.msra.mxu0 0
  %77 = vmatprep.subr.bf16.mxu0 0
  %78 = vmatpush2.bf16.msra.mxu0 0
  %79 = vmatprep.subr.bf16.mxu0 0
  %80 = vmatpush2.bf16.msra.mxu0 0
  %81 = vmatprep.subr.bf16.mxu0 0
  %82 = vmatpush2.bf16.msra.mxu0 0
  %83 = vmatprep.subr.bf16.mxu0 0
  %84 = vmatpush2.bf16.msra.mxu0 0
  %85 = vmatprep.subr.bf16.mxu0 0
  %86 = vmatpush2.bf16.msra.mxu0 0
  %87 = vmatprep.subr.bf16.mxu0 0
  %88 = vmatpush2.bf16.msra.mxu0 0
  %89 = vmatprep.mubr.bf16.mxu0 0
  %90 = vmatmul.mubr.bf16.gmra.mxu0 %v55
  %v91 = vpop.f32.mrf.mxu0
  %v92 = vadd.f32 %v39, %v91
  %v93 = vpop.f32.mrf.mxu0
  %v94 = vpop.f32.mrf.mxu0
  %v95 = vpop.f32.mrf.mxu0
  %96 = vdwg.mxu0
  %v97 = vtanh.pop %v92
  %v98 = vpack.c.bf16 %v97, %v97
  %v99 = vld [vmem:[%s3] sm:$0xf]
  %v100 = vld [vmem:[%s3 + $0x4] sm:$0xf]
  %v101 = vld [vmem:[%s3 + $0x8] sm:$0xf]
  %v102 = vld [vmem:[%s3 + $0xc] sm:$0xf]
  %v103 = vld [vmem:[%s3 + $0x10] sm:$0xf]
  %v104 = vld [vmem:[%s3 + $0x14] sm:$0xf]
  %v105 = vld [vmem:[%s3 + $0x18] sm:$0xf]
  %v106 = vld [vmem:[%s3 + $0x1c] sm:$0xf]
  %v107 = vld [vmem:[%s4] sm:$0x1]
  %v109 = vlaneseq
  %v110 = vshrl.u32 %v109, 7
  %v111 = vsub.s32 0, %v110
  %v112 = vrot.slane %v107, %v111
  %v122 = vunpack.c.l.b16 %v99
  %v123 = vunpack.c.l.b16 %v100
  %v124 = vunpack.c.l.b16 %v101
  %v125 = vunpack.c.l.b16 %v102
  %v126 = vunpack.c.l.b16 %v103
  %v127 = vunpack.c.l.b16 %v104
  %v128 = vunpack.c.l.b16 %v105
  %v129 = vunpack.c.l.b16 %v106
  %v130 = vpack.c.b16 %v123, %v122
  %v131 = vpack.c.b16 %v125, %v124
  %v132 = vpack.c.b16 %v127, %v126
  %v133 = vpack.c.b16 %v129, %v128
  %vm138 = vcmask 523264
  %v140 = vsel %vm138, %v98, 0
  %142 = vmatprep.subr.bf16.mxu0 0
  %143 = vmatpush1.bf16.msra.mxu0 0
  %144 = vmatprep.subr.bf16.mxu0 0
  %145 = vmatpush1.bf16.msra.mxu0 0
  %146 = vmatprep.subr.bf16.mxu0 0
  %147 = vmatpush1.bf16.msra.mxu0 0
  %148 = vmatprep.subr.bf16.mxu0 0
  %149 = vmatpush1.bf16.msra.mxu0 0
  %150 = vmatprep.subr.bf16.mxu0 0
  %151 = vmatpush1.bf16.msra.mxu0 %v133
  %152 = vmatprep.subr.bf16.mxu0 0
  %153 = vmatpush1.bf16.msra.mxu0 %v132
  %154 = vmatprep.subr.bf16.mxu0 0
  %155 = vmatpush1.bf16.msra.mxu0 %v131
  %156 = vmatprep.subr.bf16.mxu0 0
  %157 = vmatpush1.bf16.msra.mxu0 %v130
  %158 = vmatprep.subr.bf16.mxu0 0
  %159 = vmatpush2.bf16.msra.mxu0 0
  %160 = vmatprep.subr.bf16.mxu0 0
  %161 = vmatpush2.bf16.msra.mxu0 0
  %162 = vmatprep.subr.bf16.mxu0 0
  %163 = vmatpush2.bf16.msra.mxu0 0
  %164 = vmatprep.subr.bf16.mxu0 0
  %165 = vmatpush2.bf16.msra.mxu0 0
  %166 = vmatprep.subr.bf16.mxu0 0
  %167 = vmatpush2.bf16.msra.mxu0 0
  %168 = vmatprep.subr.bf16.mxu0 0
  %169 = vmatpush2.bf16.msra.mxu0 0
  %170 = vmatprep.subr.bf16.mxu0 0
  %171 = vmatpush2.bf16.msra.mxu0 0
  %172 = vmatprep.subr.bf16.mxu0 0
  %173 = vmatpush2.bf16.msra.mxu0 0
  %174 = vmatprep.mubr.bf16.mxu0 0
  %175 = vmatmul.mubr.bf16.gmra.mxu0 %v140
  %v176 = vpop.f32.mrf.mxu0
  %v177 = vadd.f32 %v112, %v176
  %v178 = vpop.f32.mrf.mxu0
  %v179 = vpop.f32.mrf.mxu0
  %v180 = vpop.f32.mrf.mxu0
  %181 = vdwg.mxu0
  %v182 = vtanh.pop %v177
  %v183 = vld [vmem:[%s5] sm:$0x1]
  %v185 = vlaneseq
  %v186 = vshrl.u32 %v185, 7
  %v187 = vsub.s32 0, %v186
  %v188 = vrot.slane %v183, %v187
  %v190 = vmul.f32 %v182, %v188
  %v191 = vsel %vm138, %v190, 0.0
  %192 = vadd.xlane.f32.xlu0 %v191
  %v193 = vpop.xlane.xlu0 %192
  %s194 = sld [smem:[#allocation2]]
  %v195 = vstv %s194
  %v196 = vadd.f32 %v193, %v195
  %vm197 = vcmask 7168
  %198 = vst.msk [vmem:[%s7] sm:$0xff] %vm197, %v196
  // Predicated region
  $region30: #{critic_forward.1} parent=0 // pred_check
    _
  $region31: #{critic_forward.1} parent=0 // pred_check_branch
    %200 = sbr.rel (0) target = $region33
  $region32: #{critic_forward.1} parent=0 // pred_region
    _
  $region33: #{critic_forward.1} parent=0 // pred_fallthru
    _
  // Predicated region
  $region34: #{critic_forward.1} parent=0 // pred_check
    _
  $region35: #{critic_forward.1} parent=0 // pred_check_branch
    %202 = sbr.rel (0) target = $region37
  $region36: #{critic_forward.1} parent=0 // pred_region
    _
  $region37: #{critic_forward.1} parent=0 // pred_fallthru
    _

</llo_original>
